<compile_context>
chip_gen: v5e
topology: v5e:2x2
jax: 0.10.0
libtpu: 0.0.40
codegen_flags: <defaults>
</compile_context>

<pallas_src>
import functools

import jax
import jax.numpy as jnp
from jax.experimental import pallas as pl
from jax.experimental.pallas import tpu as pltpu


def _round_up(a, b):
    return ((a + b - 1) // b) * b


def _mlp_kernel(x_ref, w1T_ref, b1_ref, w2T_ref, b2_ref,
                w3T_ref, b3_ref, w4_ref, b4_ref, o_ref,
                *, sub_tile, num_chunks):
    cdt = w2T_ref.dtype  # matmul operand dtype (f32 default, bf16 optional)

    # Weights / biases are tiny -> load once per grid step (hoisted out of
    # the chunk loop).  Biases stay as single-vreg (F,1)/(1,F) values; the
    # lane/sublane broadcast is fused into the adds below.
    w1T = w1T_ref[...]          # (hidden, input)   == torch (out, in) layout
    w2T = w2T_ref[...]          # (hidden, hidden)
    w3T = w3T_ref[...]          # (hidden, hidden)
    w4 = w4_ref[...]            # (hidden, output)  natural (in, out) layout
    b1 = b1_ref[...]            # (hidden, 1)
    b2 = b2_ref[...]            # (hidden, 1)
    b3 = b3_ref[...]            # (hidden, 1)
    b4 = b4_ref[...]            # (1, output)

    # Contraction patterns that let the MXU consume/produce the natural
    # (points, features) layout with no wrapper-side transposes.
    contract_rhs_last = (((1,), (1,)), ((), ()))    # (F,K) . (N,K)  -> (F,N)
    contract_lhs_first = (((0,), (0,)), ((), ()))   # (K,N) . (K,F)  -> (N,F)

    def chunk(j, carry):
        start = pl.multiple_of(j * sub_tile, sub_tile)

        # (sub, input) slab of points in natural row-major layout.
        x_sub = x_ref[pl.ds(start, sub_tile), :].astype(cdt)

        # Layer 1: (hidden, input) . (sub, input)^T -> (hidden, sub)
        # (points land on lanes, features on sublanes), f32 accumulate.
        h = jax.lax.dot_general(w1T, x_sub, contract_rhs_last,
                                preferred_element_type=jnp.float32)
        h = jnp.maximum(h + b1, 0.0)

        # Layers 2 & 3: (hidden, hidden) @ (hidden, sub); f32 epilogue so the
        # bias add / ReLU are safe on v5e (no bf16 VPU there).
        h = jnp.dot(w2T, h.astype(cdt), preferred_element_type=jnp.float32)
        h = jnp.maximum(h + b2, 0.0)

        h = jnp.dot(w3T, h.astype(cdt), preferred_element_type=jnp.float32)
        h = jnp.maximum(h + b3, 0.0)

        # Output layer: (hidden, sub)^T . (hidden, output) -> (sub, output),
        # written straight back in the natural (points, features) layout.
        out = jax.lax.dot_general(h.astype(cdt), w4, contract_lhs_first,
                                  preferred_element_type=jnp.float32)
        o_ref[pl.ds(start, sub_tile), :] = (out + b4).astype(o_ref.dtype)
        return carry

    # Fully unrolled so the LLO scheduler sees straight-line code.
    jax.lax.fori_loop(0, num_chunks, chunk, 0, unroll=True)


@functools.partial(jax.jit, static_argnames=("col_tile", "sub_tile", "use_bf16"))
def atmosphere_net_forward(x, params, *, col_tile=4096, sub_tile=256,
                           use_bf16=False):
    """x: (batch, depth_points, input_size) -> (batch, depth_points, output_size)."""
    w1, b1, w2, b2, w3, b3, w4, b4 = params
    batch, depth_points, input_size = x.shape
    hidden = w1.shape[1]
    output_size = w4.shape[1]
    n_rows = batch * depth_points

    # ---- tile / grid selection -------------------------------------------
    n128 = _round_up(n_rows, 128)
    tile = min(_round_up(col_tile, 128), n128)
    # Keep >= 2 grid steps when there is enough work so the "parallel" axis
    # can shard across v7x's two TensorCores (single-TC v5e/v6e: harmless).
    if tile >= n128 and n128 >= 256:
        tile = _round_up(n128 // 2, 128)
    tile = max(tile, 128)
    # Inner chunk width: fills the MXU's N dimension while keeping the f32
    # intermediates + narrow edge slabs comfortably inside the vreg file.
    sub = min(_round_up(sub_tile, 128), tile)
    if tile % sub != 0:
        sub = tile
    num_chunks = tile // sub

    n_pad = _round_up(n_rows, tile)
    grid = (n_pad // tile,)

    mm_dtype = jnp.bfloat16 if use_bf16 else jnp.float32

    # Natural (points, features) layout; only a cheap contiguous row pad.
    x2d = x.reshape(n_rows, input_size)
    if n_pad != n_rows:
        x2d = jnp.pad(x2d, ((0, n_pad - n_rows), (0, 0)))
    x2d = x2d.astype(mm_dtype)

    # Layers 1-3 weights pre-transposed to (out_features, in_features) so the
    # hidden intermediates are computed feature-major (points on lanes);
    # layer 4 stays (in, out) so its result lands points-major for the store.
    w1T = w1.T.astype(mm_dtype)
    w2T = w2.T.astype(mm_dtype)
    w3T = w3.T.astype(mm_dtype)
    w4n = w4.astype(mm_dtype)
    b1c = b1.reshape(hidden, 1).astype(jnp.float32)
    b2c = b2.reshape(hidden, 1).astype(jnp.float32)
    b3c = b3.reshape(hidden, 1).astype(jnp.float32)
    b4r = b4.reshape(1, output_size).astype(jnp.float32)

    # Weights/biases: full-array blocks with a constant index map -> resident
    # in VMEM across grid steps (no per-step re-DMA).
    # TODO(synk): the 8 weight/bias operands could be packed into 2 stacked
    # arrays to shave per-step bookkeeping; low value at this tile size.
    full = lambda shape: pl.BlockSpec(shape, lambda i: (0, 0))

    kernel = functools.partial(_mlp_kernel, sub_tile=sub, num_chunks=num_chunks)

    out2d = pl.pallas_call(
        kernel,
        out_shape=jax.ShapeDtypeStruct((n_pad, output_size), x.dtype),
        grid_spec=pltpu.PrefetchScalarGridSpec(
            num_scalar_prefetch=0,
            grid=grid,
            in_specs=[
                pl.BlockSpec((tile, input_size), lambda i: (i, 0)),
                full(w1T.shape), full(b1c.shape),
                full(w2T.shape), full(b2c.shape),
                full(w3T.shape), full(b3c.shape),
                full(w4n.shape), full(b4r.shape),
            ],
            out_specs=pl.BlockSpec((tile, output_size), lambda i: (i, 0)),
        ),
        compiler_params=pltpu.CompilerParams(
            dimension_semantics=("parallel",),
            vmem_limit_bytes=32 * 1024 * 1024,
        ),
    )(x2d, w1T, b1c, w2T, b2c, w3T, b3c, w4n, b4r)

    out2d = out2d[:n_rows]   # drop padded rows (they hold ReLU(bias) garbage)
    return out2d.reshape(batch, depth_points, output_size)


def init_params(key, input_size, hidden_size, output_size):
    """PyTorch-Linear-style init: U(-1/sqrt(fan_in), +1/sqrt(fan_in))."""
    dims = [(input_size, hidden_size),
            (hidden_size, hidden_size),
            (hidden_size, hidden_size),
            (hidden_size, output_size)]
    params = []
    for fan_in, fan_out in dims:
        key, kw, kb = jax.random.split(key, 3)
        bound = 1.0 / (float(fan_in) ** 0.5)
        w = jax.random.uniform(kw, (fan_in, fan_out), jnp.float32, -bound, bound)
        b = jax.random.uniform(kb, (fan_out,), jnp.float32, -bound, bound)
        params.extend([w, b])
    return tuple(params)


def _reference_forward(x, params):
    w1, b1, w2, b2, w3, b3, w4, b4 = params
    batch, depth, in_sz = x.shape
    h = x.reshape(-1, in_sz)
    h = jnp.maximum(h @ w1 + b1, 0.0)
    h = jnp.maximum(h @ w2 + b2, 0.0)
    h = jnp.maximum(h @ w3 + b3, 0.0)
    out = h @ w4 + b4
    return out.reshape(batch, depth, -1)


if __name__ == "__main__":
    # Small shapes consistent with the module's forward:
    # input_size=5, output_size=6; hidden scaled down to 32 for the test.
    input_size, hidden_size, output_size = 5, 32, 6

    key = jax.random.PRNGKey(0)
    params_key, kx1, kx2 = jax.random.split(key, 3)
    params = init_params(params_key, input_size, hidden_size, output_size)

    # Case 1: tiny input (single grid step, single inner chunk).
    batch, depth_points = 2, 8
    x = jax.random.normal(kx1, (batch, depth_points, input_size), jnp.float32)
    ref = _reference_forward(x, params)
    out = jax.block_until_ready(atmosphere_net_forward(x, params))
    assert out.shape == (batch, depth_points, output_size), out.shape
    assert jnp.allclose(out, ref, atol=1e-5, rtol=1e-5), "f32 mismatch (case 1)"

    # Case 2: larger N -> multi-step grid, row padding, multiple inner chunks.
    batch2, depth2 = 4, 200
    x2 = jax.random.normal(kx2, (batch2, depth2, input_size), jnp.float32)
    ref2 = _reference_forward(x2, params)
    out2 = jax.block_until_ready(
        atmosphere_net_forward(x2, params, col_tile=1024, sub_tile=256))
    assert out2.shape == (batch2, depth2, output_size), out2.shape
    assert jnp.allclose(out2, ref2, atol=1e-5, rtol=1e-5), "f32 mismatch (case 2)"

    # Optional bf16-operand path: only exercised on real TPU hardware (the
    # CPU interpret backend cannot execute bf16 x bf16 -> f32 dots).
    if jax.default_backend() == "tpu":
        out_bf16 = jax.block_until_ready(
            atmosphere_net_forward(x2, params, use_bf16=True))
        assert jnp.allclose(out_bf16, ref2, atol=5e-2, rtol=5e-2), \
            "bf16 mismatch vs reference"

    print("KERNEL_OK")
</pallas_src>

<mosaic_0001>
module attributes {stable_mosaic.version = 11 : i64} {
  func.func @_mlp_kernel(%arg0: i32, %arg1: memref<128x5xf32, #tpu.memory_space<vmem>>, %arg2: memref<32x5xf32, #tpu.memory_space<vmem>>, %arg3: memref<32x1xf32, #tpu.memory_space<vmem>>, %arg4: memref<32x32xf32, #tpu.memory_space<vmem>>, %arg5: memref<32x1xf32, #tpu.memory_space<vmem>>, %arg6: memref<32x32xf32, #tpu.memory_space<vmem>>, %arg7: memref<32x1xf32, #tpu.memory_space<vmem>>, %arg8: memref<32x6xf32, #tpu.memory_space<vmem>>, %arg9: memref<1x6xf32, #tpu.memory_space<vmem>>, %arg10: memref<128x6xf32, #tpu.memory_space<vmem>>) attributes {dimension_semantics = [#tpu.dimension_semantics<parallel>], iteration_bounds = array<i64: 1>, scalar_prefetch = 0 : i64, scratch_operands = 0 : i64, tpu.core_type = #tpu.core_type<tc>, window_params = [{transform_indices = @transform_0, window_bounds = array<i64: 128, 5>}, {pipeline_mode = #tpu.pipeline_mode<synchronous>, transform_indices = @transform_1, window_bounds = array<i64: 32, 5>}, {pipeline_mode = #tpu.pipeline_mode<synchronous>, transform_indices = @transform_2, window_bounds = array<i64: 32, 1>}, {pipeline_mode = #tpu.pipeline_mode<synchronous>, transform_indices = @transform_3, window_bounds = array<i64: 32, 32>}, {pipeline_mode = #tpu.pipeline_mode<synchronous>, transform_indices = @transform_4, window_bounds = array<i64: 32, 1>}, {pipeline_mode = #tpu.pipeline_mode<synchronous>, transform_indices = @transform_5, window_bounds = array<i64: 32, 32>}, {pipeline_mode = #tpu.pipeline_mode<synchronous>, transform_indices = @transform_6, window_bounds = array<i64: 32, 1>}, {pipeline_mode = #tpu.pipeline_mode<synchronous>, transform_indices = @transform_7, window_bounds = array<i64: 32, 6>}, {pipeline_mode = #tpu.pipeline_mode<synchronous>, transform_indices = @transform_8, window_bounds = array<i64: 1, 6>}, {transform_indices = @transform_9, window_bounds = array<i64: 128, 6>}]} {
    %c0 = arith.constant 0 : index
    %c0_0 = arith.constant 0 : index
    %0 = vector.load %arg2[%c0, %c0_0] : memref<32x5xf32, #tpu.memory_space<vmem>>, vector<32x5xf32>
    %c0_1 = arith.constant 0 : index
    %c0_2 = arith.constant 0 : index
    %1 = vector.load %arg4[%c0_1, %c0_2] : memref<32x32xf32, #tpu.memory_space<vmem>>, vector<32x32xf32>
    %c0_3 = arith.constant 0 : index
    %c0_4 = arith.constant 0 : index
    %2 = vector.load %arg6[%c0_3, %c0_4] : memref<32x32xf32, #tpu.memory_space<vmem>>, vector<32x32xf32>
    %c0_5 = arith.constant 0 : index
    %c0_6 = arith.constant 0 : index
    %3 = vector.load %arg8[%c0_5, %c0_6] : memref<32x6xf32, #tpu.memory_space<vmem>>, vector<32x6xf32>
    %c0_7 = arith.constant 0 : index
    %c0_8 = arith.constant 0 : index
    %4 = vector.load %arg3[%c0_7, %c0_8] : memref<32x1xf32, #tpu.memory_space<vmem>>, vector<32x1xf32>
    %c0_9 = arith.constant 0 : index
    %c0_10 = arith.constant 0 : index
    %5 = vector.load %arg5[%c0_9, %c0_10] : memref<32x1xf32, #tpu.memory_space<vmem>>, vector<32x1xf32>
    %c0_11 = arith.constant 0 : index
    %c0_12 = arith.constant 0 : index
    %6 = vector.load %arg7[%c0_11, %c0_12] : memref<32x1xf32, #tpu.memory_space<vmem>>, vector<32x1xf32>
    %c0_13 = arith.constant 0 : index
    %c0_14 = arith.constant 0 : index
    %7 = vector.load %arg9[%c0_13, %c0_14] : memref<1x6xf32, #tpu.memory_space<vmem>>, vector<1x6xf32>
    %c0_i32 = arith.constant 0 : i32
    %c128_i32 = arith.constant 128 : i32
    %8 = arith.muli %c0_i32, %c128_i32 : i32
    %9 = tpu.assume_multiple %8, 128 : i32
    %10 = arith.index_cast %9 : i32 to index
    %c0_15 = arith.constant 0 : index
    %11 = vector.load %arg1[%10, %c0_15] : memref<128x5xf32, #tpu.memory_space<vmem>>, vector<128x5xf32>
    %cst = arith.constant dense<0.000000e+00> : vector<32x128xf32>
    %12 = tpu.matmul %0, %11, %cst {dimension_numbers = #tpu.dot_dimension_numbers<[1], [1], [0], [0], [0, 0, 1, 0], [], []>} : vector<32x5xf32>, vector<128x5xf32>, vector<32x128xf32> -> vector<32x128xf32>
    %13 = vector.broadcast %4 : vector<32x1xf32> to vector<32x128xf32>
    %14 = arith.addf %12, %13 : vector<32x128xf32>
    %cst_16 = arith.constant 0.000000e+00 : f32
    %15 = vector.broadcast %cst_16 : f32 to vector<32x128xf32>
    %16 = arith.maximumf %14, %15 : vector<32x128xf32>
    %cst_17 = arith.constant dense<0.000000e+00> : vector<32x128xf32>
    %17 = tpu.matmul %1, %16, %cst_17 {dimension_numbers = #tpu.dot_dimension_numbers<[1], [0], [0], [1], [0, 0, 1, 1], [], []>} : vector<32x32xf32>, vector<32x128xf32>, vector<32x128xf32> -> vector<32x128xf32>
    %18 = vector.broadcast %5 : vector<32x1xf32> to vector<32x128xf32>
    %19 = arith.addf %17, %18 : vector<32x128xf32>
    %cst_18 = arith.constant 0.000000e+00 : f32
    %20 = vector.broadcast %cst_18 : f32 to vector<32x128xf32>
    %21 = arith.maximumf %19, %20 : vector<32x128xf32>
    %cst_19 = arith.constant dense<0.000000e+00> : vector<32x128xf32>
    %22 = tpu.matmul %2, %21, %cst_19 {dimension_numbers = #tpu.dot_dimension_numbers<[1], [0], [0], [1], [0, 0, 1, 1], [], []>} : vector<32x32xf32>, vector<32x128xf32>, vector<32x128xf32> -> vector<32x128xf32>
    %23 = vector.broadcast %6 : vector<32x1xf32> to vector<32x128xf32>
    %24 = arith.addf %22, %23 : vector<32x128xf32>
    %cst_20 = arith.constant 0.000000e+00 : f32
    %25 = vector.broadcast %cst_20 : f32 to vector<32x128xf32>
    %26 = arith.maximumf %24, %25 : vector<32x128xf32>
    %cst_21 = arith.constant dense<0.000000e+00> : vector<128x6xf32>
    %27 = tpu.matmul %26, %3, %cst_21 {dimension_numbers = #tpu.dot_dimension_numbers<[0], [0], [1], [1], [0, 1, 1, 1], [], []>} : vector<32x128xf32>, vector<32x6xf32>, vector<128x6xf32> -> vector<128x6xf32>
    %28 = vector.broadcast %7 : vector<1x6xf32> to vector<128x6xf32>
    %29 = arith.addf %27, %28 : vector<128x6xf32>
    %30 = arith.index_cast %9 : i32 to index
    %c0_22 = arith.constant 0 : index
    %31 = vector.load %arg10[%30, %c0_22] : memref<128x6xf32, #tpu.memory_space<vmem>>, vector<128x6xf32>
    tpu.vector_store %arg10[%30, %c0_22], %29 {strides = array<i32>} : memref<128x6xf32, #tpu.memory_space<vmem>>, vector<128x6xf32>,
    %c1_i32 = arith.constant 1 : i32
    return
  }
  func.func @transform_0(%arg0: i32) -> (i32, i32) {
    %c0_i32 = arith.constant 0 : i32
    %c0_i32_0 = arith.constant 0 : i32
    return %arg0, %c0_i32 : i32, i32
  }
  func.func @transform_1(%arg0: i32) -> (i32, i32) {
    %c0_i32 = arith.constant 0 : i32
    %c0_i32_0 = arith.constant 0 : i32
    %c0_i32_1 = arith.constant 0 : i32
    return %c0_i32, %c0_i32_0 : i32, i32
  }
  func.func @transform_2(%arg0: i32) -> (i32, i32) {
    %c0_i32 = arith.constant 0 : i32
    %c0_i32_0 = arith.constant 0 : i32
    %c0_i32_1 = arith.constant 0 : i32
    return %c0_i32, %c0_i32_0 : i32, i32
  }
  func.func @transform_3(%arg0: i32) -> (i32, i32) {
    %c0_i32 = arith.constant 0 : i32
    %c0_i32_0 = arith.constant 0 : i32
    %c0_i32_1 = arith.constant 0 : i32
    return %c0_i32, %c0_i32_0 : i32, i32
  }
  func.func @transform_4(%arg0: i32) -> (i32, i32) {
    %c0_i32 = arith.constant 0 : i32
    %c0_i32_0 = arith.constant 0 : i32
    %c0_i32_1 = arith.constant 0 : i32
    return %c0_i32, %c0_i32_0 : i32, i32
  }
  func.func @transform_5(%arg0: i32) -> (i32, i32) {
    %c0_i32 = arith.constant 0 : i32
    %c0_i32_0 = arith.constant 0 : i32
    %c0_i32_1 = arith.constant 0 : i32
    return %c0_i32, %c0_i32_0 : i32, i32
  }
  func.func @transform_6(%arg0: i32) -> (i32, i32) {
    %c0_i32 = arith.constant 0 : i32
    %c0_i32_0 = arith.constant 0 : i32
    %c0_i32_1 = arith.constant 0 : i32
    return %c0_i32, %c0_i32_0 : i32, i32
  }
  func.func @transform_7(%arg0: i32) -> (i32, i32) {
    %c0_i32 = arith.constant 0 : i32
    %c0_i32_0 = arith.constant 0 : i32
    %c0_i32_1 = arith.constant 0 : i32
    return %c0_i32, %c0_i32_0 : i32, i32
  }
  func.func @transform_8(%arg0: i32) -> (i32, i32) {
    %c0_i32 = arith.constant 0 : i32
    %c0_i32_0 = arith.constant 0 : i32
    %c0_i32_1 = arith.constant 0 : i32
    return %c0_i32, %c0_i32_0 : i32, i32
  }
  func.func @transform_9(%arg0: i32) -> (i32, i32) {
    %c0_i32 = arith.constant 0 : i32
    %c0_i32_0 = arith.constant 0 : i32
    return %arg0, %c0_i32 : i32, i32
  }
}

</mosaic_0001>

<llo_original>
// kernel: atmosphere_net_forward.1
$region0: #{atmosphere_net_forward.1}
  #allocation0 [shape = 'u32[]', space=smem, size = 0x4, offset = 0x4, fixed_abs, tag = 'smem constant byte address 0x4 - core index']
  #allocation1 [shape = 'u32[72,128]{1,0:T(1,128)}', space=vmem, size = 0x9000, scoped, tag = 'internal scratch']
  %s0 = inlined_call_operand.vmem [shape: f32[128,5], index: 0, kind: input, shape index: {}]
  %s1 = inlined_call_operand.vmem [shape: f32[32,5], index: 1, kind: input, shape index: {}]
  %s2 = inlined_call_operand.vmem [shape: f32[32,1], index: 2, kind: input, shape index: {}]
  %s3 = inlined_call_operand.vmem [shape: f32[32,32], index: 3, kind: input, shape index: {}]
  %s4 = inlined_call_operand.vmem [shape: f32[32,1], index: 4, kind: input, shape index: {}]
  %s5 = inlined_call_operand.vmem [shape: f32[32,32], index: 5, kind: input, shape index: {}]
  %s6 = inlined_call_operand.vmem [shape: f32[32,1], index: 6, kind: input, shape index: {}]
  %s7 = inlined_call_operand.vmem [shape: f32[32,6], index: 7, kind: input, shape index: {}]
  %s8 = inlined_call_operand.vmem [shape: f32[1,6], index: 8, kind: input, shape index: {}]
  %s9 = inlined_call_operand.vmem [shape: f32[128,6], index: 9, kind: output, shape index: {}]
  %s10 = sld [smem:[#allocation0]]
  $region46: #{atmosphere_net_forward.1} parent=0
    _
  %s12 = ssub.s32 1, %s10
  %s13 = scalar_select 0, %s12, %s10
  // Predicated region
  $region2: #{atmosphere_net_forward.1} parent=0 // pred_check
    _
  $region3: #{atmosphere_net_forward.1} parent=0 // pred_check_branch
    %15 = sbr.rel (0) target = $region5
  $region4: #{atmosphere_net_forward.1} parent=0 // pred_region
    _
  $region5: #{atmosphere_net_forward.1} parent=0 // pred_fallthru
    _
  // Predicated region
  $region6: #{atmosphere_net_forward.1} parent=0 // pred_check
    _
  $region7: #{atmosphere_net_forward.1} parent=0 // pred_check_branch
    %17 = sbr.rel (0) target = $region9
  $region8: #{atmosphere_net_forward.1} parent=0 // pred_region
    _
  $region9: #{atmosphere_net_forward.1} parent=0 // pred_fallthru
    _
  // Predicated region
  $region10: #{atmosphere_net_forward.1} parent=0 // pred_check
    _
  $region11: #{atmosphere_net_forward.1} parent=0 // pred_check_branch
    %19 = sbr.rel (0) target = $region13
  $region12: #{atmosphere_net_forward.1} parent=0 // pred_region
    _
  $region13: #{atmosphere_net_forward.1} parent=0 // pred_fallthru
    _
  // Predicated region
  $region14: #{atmosphere_net_forward.1} parent=0 // pred_check
    _
  $region15: #{atmosphere_net_forward.1} parent=0 // pred_check_branch
    %21 = sbr.rel (0) target = $region17
  $region16: #{atmosphere_net_forward.1} parent=0 // pred_region
    _
  $region17: #{atmosphere_net_forward.1} parent=0 // pred_fallthru
    _
  // Predicated region
  $region18: #{atmosphere_net_forward.1} parent=0 // pred_check
    _
  $region19: #{atmosphere_net_forward.1} parent=0 // pred_check_branch
    %23 = sbr.rel (0) target = $region21
  $region20: #{atmosphere_net_forward.1} parent=0 // pred_region
    _
  $region21: #{atmosphere_net_forward.1} parent=0 // pred_fallthru
    _
  // Predicated region
  $region22: #{atmosphere_net_forward.1} parent=0 // pred_check
    _
  $region23: #{atmosphere_net_forward.1} parent=0 // pred_check_branch
    %25 = sbr.rel (0) target = $region25
  $region24: #{atmosphere_net_forward.1} parent=0 // pred_region
    _
  $region25: #{atmosphere_net_forward.1} parent=0 // pred_fallthru
    _
  // Predicated region
  $region26: #{atmosphere_net_forward.1} parent=0 // pred_check
    _
  $region27: #{atmosphere_net_forward.1} parent=0 // pred_check_branch
    %27 = sbr.rel (0) target = $region29
  $region28: #{atmosphere_net_forward.1} parent=0 // pred_region
    _
  $region29: #{atmosphere_net_forward.1} parent=0 // pred_fallthru
    _
  // Predicated region
  $region30: #{atmosphere_net_forward.1} parent=0 // pred_check
    _
  $region31: #{atmosphere_net_forward.1} parent=0 // pred_check_branch
    %29 = sbr.rel (0) target = $region33
  $region32: #{atmosphere_net_forward.1} parent=0 // pred_region
    _
  $region33: #{atmosphere_net_forward.1} parent=0 // pred_fallthru
    _
  // Predicated region
  $region34: #{atmosphere_net_forward.1} parent=0 // pred_check
    _
  $region35: #{atmosphere_net_forward.1} parent=0 // pred_check_branch
    %31 = sbr.rel (0) target = $region37
  $region36: #{atmosphere_net_forward.1} parent=0 // pred_region
    _
  $region37: #{atmosphere_net_forward.1} parent=0 // pred_fallthru
    _
  %v32 = vld [vmem:[%s1] sm:$0xff]
  %v33 = vld [vmem:[%s1 + $0x8] sm:$0xff]
  %v34 = vld [vmem:[%s1 + $0x10] sm:$0xff]
  %v35 = vld [vmem:[%s1 + $0x18] sm:$0xff]
  %v36 = vld [vmem:[%s3] sm:$0xff]
  %v37 = vld [vmem:[%s3 + $0x8] sm:$0xff]
  %v38 = vld [vmem:[%s3 + $0x10] sm:$0xff]
  %v39 = vld [vmem:[%s3 + $0x18] sm:$0xff]
  %v40 = vld [vmem:[%s5] sm:$0xff]
  %v41 = vld [vmem:[%s5 + $0x8] sm:$0xff]
  %v42 = vld [vmem:[%s5 + $0x10] sm:$0xff]
  %v43 = vld [vmem:[%s5 + $0x18] sm:$0xff]
  %v44 = vld [vmem:[%s7] sm:$0xff]
  %v45 = vld [vmem:[%s7 + $0x8] sm:$0xff]
  %v46 = vld [vmem:[%s7 + $0x10] sm:$0xff]
  %v47 = vld [vmem:[%s7 + $0x18] sm:$0xff]
  %v48 = vld [vmem:[%s2] sm:$0xff]
  %v49 = vld [vmem:[%s2 + $0x8] sm:$0xff]
  %v50 = vld [vmem:[%s2 + $0x10] sm:$0xff]
  %v51 = vld [vmem:[%s2 + $0x18] sm:$0xff]
  %v52 = vld [vmem:[%s4] sm:$0xff]
  %v53 = vld [vmem:[%s4 + $0x8] sm:$0xff]
  %v54 = vld [vmem:[%s4 + $0x10] sm:$0xff]
  %v55 = vld [vmem:[%s4 + $0x18] sm:$0xff]
  %v56 = vld [vmem:[%s6] sm:$0xff]
  %v57 = vld [vmem:[%s6 + $0x8] sm:$0xff]
  %v58 = vld [vmem:[%s6 + $0x10] sm:$0xff]
  %v59 = vld [vmem:[%s6 + $0x18] sm:$0xff]
  %v60 = vld [vmem:[%s8] sm:$0x1]
  %v61 = vld [vmem:[%s0] sm:$0xff]
  %v62 = vld [vmem:[%s0 + $0x8] sm:$0xff]
  %v63 = vld [vmem:[%s0 + $0x10] sm:$0xff]
  %v64 = vld [vmem:[%s0 + $0x18] sm:$0xff]
  %v65 = vld [vmem:[%s0 + $0x20] sm:$0xff]
  %v66 = vld [vmem:[%s0 + $0x28] sm:$0xff]
  %v67 = vld [vmem:[%s0 + $0x30] sm:$0xff]
  %v68 = vld [vmem:[%s0 + $0x38] sm:$0xff]
  %v69 = vld [vmem:[%s0 + $0x40] sm:$0xff]
  %v70 = vld [vmem:[%s0 + $0x48] sm:$0xff]
  %v71 = vld [vmem:[%s0 + $0x50] sm:$0xff]
  %v72 = vld [vmem:[%s0 + $0x58] sm:$0xff]
  %v73 = vld [vmem:[%s0 + $0x60] sm:$0xff]
  %v74 = vld [vmem:[%s0 + $0x68] sm:$0xff]
  %v75 = vld [vmem:[%s0 + $0x70] sm:$0xff]
  %v76 = vld [vmem:[%s0 + $0x78] sm:$0xff]
  %78 = vset.pattern.permute.xlu0 0
  %79 = vperm.xlu0 %78, %v48
  %v80 = vpop.permute.xlu0 %79
  %83 = vset.pattern.permute.xlu0 0
  %84 = vperm.xlu0 %83, %v49
  %v85 = vpop.permute.xlu0 %84
  %88 = vset.pattern.permute.xlu0 0
  %89 = vperm.xlu0 %88, %v50
  %v90 = vpop.permute.xlu0 %89
  %93 = vset.pattern.permute.xlu0 0
  %94 = vperm.xlu0 %93, %v51
  %v95 = vpop.permute.xlu0 %94
  %vm97 = vcmask 39936
  %v99 = vsel %vm97, %v32, 0
  %v102 = vsel %vm97, %v33, 0
  %v105 = vsel %vm97, %v34, 0
  %v108 = vsel %vm97, %v35, 0
  %v111 = vsel %vm97, %v61, 0
  %v114 = vsel %vm97, %v62, 0
  %v117 = vsel %vm97, %v63, 0
  %v120 = vsel %vm97, %v64, 0
  %v123 = vsel %vm97, %v65, 0
  %v126 = vsel %vm97, %v66, 0
  %v129 = vsel %vm97, %v67, 0
  %v132 = vsel %vm97, %v68, 0
  %v135 = vsel %vm97, %v69, 0
  %v138 = vsel %vm97, %v70, 0
  %v141 = vsel %vm97, %v71, 0
  %v144 = vsel %vm97, %v72, 0
  %v147 = vsel %vm97, %v73, 0
  %v150 = vsel %vm97, %v74, 0
  %v153 = vsel %vm97, %v75, 0
  %v156 = vsel %vm97, %v76, 0
  %158 = vmatpush.xpose.msra.mxu0 %v156
  %159 = vmatpush.xpose.msra.mxu0 %v153
  %160 = vmatpush.xpose.msra.mxu0 %v150
  %161 = vmatpush.xpose.msra.mxu0 %v147
  %162 = vmatpush.xpose.msra.mxu0 %v144
  %163 = vmatpush.xpose.msra.mxu0 %v141
  %164 = vmatpush.xpose.msra.mxu0 %v138
  %165 = vmatpush.xpose.msra.mxu0 %v135
  %166 = vmatpush.xpose.msra.mxu0 %v132
  %167 = vmatpush.xpose.msra.mxu0 %v129
  %168 = vmatpush.xpose.msra.mxu0 %v126
  %169 = vmatpush.xpose.msra.mxu0 %v123
  %170 = vmatpush.xpose.msra.mxu0 %v120
  %171 = vmatpush.xpose.msra.mxu0 %v117
  %172 = vmatpush.xpose.msra.mxu0 %v114
  %173 = vmatpush.xpose.msra.mxu0 %v111
  %174 = vmatmul.f32.gmra.mxu0 %v99
  %v175 = vpop.f32.mrf.mxu0
  %v176 = vadd.f32 %v80, %v175
  %177 = vmatmul.f32.gmra.mxu0 %v102
  %v178 = vpop.f32.mrf.mxu0
  %v179 = vadd.f32 %v85, %v178
  %180 = vmatmul.f32.gmra.mxu0 %v105
  %v181 = vpop.f32.mrf.mxu0
  %v182 = vadd.f32 %v90, %v181
  %183 = vmatmul.f32.gmra.mxu0 %v108
  %v184 = vpop.f32.mrf.mxu0
  %v185 = vadd.f32 %v95, %v184
  %186 = vdwg.mxu0
  %v187 = vmax.f32 %v176, 0.0
  %v188 = vmax.f32 %v179, 0.0
  %v189 = vmax.f32 %v182, 0.0
  %v190 = vmax.f32 %v185, 0.0
  %192 = vset.pattern.permute.xlu0 0
  %193 = vperm.xlu0 %192, %v52
  %v194 = vpop.permute.xlu0 %193
  %197 = vset.pattern.permute.xlu0 0
  %198 = vperm.xlu0 %197, %v53
  %v199 = vpop.permute.xlu0 %198
  %202 = vset.pattern.permute.xlu0 0
  %203 = vperm.xlu0 %202, %v54
  %v204 = vpop.permute.xlu0 %203
  %207 = vset.pattern.permute.xlu0 0
  %208 = vperm.xlu0 %207, %v55
  %v209 = vpop.permute.xlu0 %208
  %vm211 = vcmask 261120
  %v213 = vsel %vm211, %v36, 0
  %v216 = vsel %vm211, %v37, 0
  %v219 = vsel %vm211, %v38, 0
  %v222 = vsel %vm211, %v39, 0
  %224 = vmatpush.msra.mxu0 0.0
  %225 = vmatpush.msra.mxu0 0.0
  %226 = vmatpush.msra.mxu0 0.0
  %227 = vmatpush.msra.mxu0 0.0
  %228 = vmatpush.msra.mxu0 0.0
  %229 = vmatpush.msra.mxu0 0.0
  %230 = vmatpush.msra.mxu0 0.0
  %231 = vmatpush.msra.mxu0 0.0
  %232 = vmatpush.msra.mxu0 0.0
  %233 = vmatpush.msra.mxu0 0.0
  %234 = vmatpush.msra.mxu0 0.0
  %235 = vmatpush.msra.mxu0 0.0
  %236 = vmatpush.msra.mxu0 %v190
  %237 = vmatpush.msra.mxu0 %v189
  %238 = vmatpush.msra.mxu0 %v188
  %239 = vmatpush.msra.mxu0 %v187
  %240 = vmatmul.f32.gmra.mxu0 %v213
  %v241 = vpop.f32.mrf.mxu0
  %v242 = vadd.f32 %v194, %v241
  %243 = vmatmul.f32.gmra.mxu0 %v216
  %v244 = vpop.f32.mrf.mxu0
  %v245 = vadd.f32 %v199, %v244
  %246 = vmatmul.f32.gmra.mxu0 %v219
  %v247 = vpop.f32.mrf.mxu0
  %v248 = vadd.f32 %v204, %v247
  %249 = vmatmul.f32.gmra.mxu0 %v222
  %v250 = vpop.f32.mrf.mxu0
  %v251 = vadd.f32 %v209, %v250
  %252 = vdwg.mxu0
  %v253 = vmax.f32 %v242, 0.0
  %v254 = vmax.f32 %v245, 0.0
  %v255 = vmax.f32 %v248, 0.0
  %v256 = vmax.f32 %v251, 0.0
  %258 = vset.pattern.permute.xlu0 0
  %259 = vperm.xlu0 %258, %v56
  %v260 = vpop.permute.xlu0 %259
  %263 = vset.pattern.permute.xlu0 0
  %264 = vperm.xlu0 %263, %v57
  %v265 = vpop.permute.xlu0 %264
  %268 = vset.pattern.permute.xlu0 0
  %269 = vperm.xlu0 %268, %v58
  %v270 = vpop.permute.xlu0 %269
  %273 = vset.pattern.permute.xlu0 0
  %274 = vperm.xlu0 %273, %v59
  %v275 = vpop.permute.xlu0 %274
  %v278 = vsel %vm211, %v40, 0
  %v281 = vsel %vm211, %v41, 0
  %v284 = vsel %vm211, %v42, 0
  %v287 = vsel %vm211, %v43, 0
  %289 = vmatpush.msra.mxu0 0.0
  %290 = vmatpush.msra.mxu0 0.0
  %291 = vmatpush.msra.mxu0 0.0
  %292 = vmatpush.msra.mxu0 0.0
  %293 = vmatpush.msra.mxu0 0.0
  %294 = vmatpush.msra.mxu0 0.0
  %295 = vmatpush.msra.mxu0 0.0
  %296 = vmatpush.msra.mxu0 0.0
  %297 = vmatpush.msra.mxu0 0.0
  %298 = vmatpush.msra.mxu0 0.0
  %299 = vmatpush.msra.mxu0 0.0
  %300 = vmatpush.msra.mxu0 0.0
  %301 = vmatpush.msra.mxu0 %v256
  %302 = vmatpush.msra.mxu0 %v255
  %303 = vmatpush.msra.mxu0 %v254
  %304 = vmatpush.msra.mxu0 %v253
  %305 = vmatmul.f32.gmra.mxu0 %v278
  %v306 = vpop.f32.mrf.mxu0
  %v307 = vadd.f32 %v260, %v306
  %308 = vmatmul.f32.gmra.mxu0 %v281
  %v309 = vpop.f32.mrf.mxu0
  %v310 = vadd.f32 %v265, %v309
  %311 = vmatmul.f32.gmra.mxu0 %v284
  %v312 = vpop.f32.mrf.mxu0
  %v313 = vadd.f32 %v270, %v312
  %314 = vmatmul.f32.gmra.mxu0 %v287
  %v315 = vpop.f32.mrf.mxu0
  %v316 = vadd.f32 %v275, %v315
  %317 = vdwg.mxu0
  %v318 = vmax.f32 %v307, 0.0
  %v319 = vmax.f32 %v310, 0.0
  %v320 = vmax.f32 %v313, 0.0
  %v321 = vmax.f32 %v316, 0.0
  %v323 = vperm.slane %v60, 0
  %325 = vxpose.xlu0.b32.start [1/16] %v318, 128
  %326 = vxpose.xlu0.b32.cont [2/16] %v319, 128
  %327 = vxpose.xlu0.b32.cont [3/16] %v320, 128
  %328 = vxpose.xlu0.b32.cont [4/16] %v321, 128
  %329 = vxpose.xlu0.b32.cont [5/16] 0.0, 128
  %330 = vxpose.xlu0.b32.cont [6/16] 0.0, 128
  %331 = vxpose.xlu0.b32.cont [7/16] 0.0, 128
  %332 = vxpose.xlu0.b32.cont [8/16] 0.0, 128
  %333 = vxpose.xlu0.b32.cont [9/16] 0.0, 128
  %334 = vxpose.xlu0.b32.cont [10/16] 0.0, 128
  %335 = vxpose.xlu0.b32.cont [11/16] 0.0, 128
  %336 = vxpose.xlu0.b32.cont [12/16] 0.0, 128
  %337 = vxpose.xlu0.b32.cont [13/16] 0.0, 128
  %338 = vxpose.xlu0.b32.cont [14/16] 0.0, 128
  %339 = vxpose.xlu0.b32.cont [15/16] 0.0, 128
  %340 = vxpose.xlu0.b32.end [16/16] 0.0, 128
  %v341 = vpop.trf.xlu0
  %v342 = vpop.trf.xlu0
  %v343 = vpop.trf.xlu0
  %v344 = vpop.trf.xlu0
  %v345 = vpop.trf.xlu0
  %v346 = vpop.trf.xlu0
  %v347 = vpop.trf.xlu0
  %v348 = vpop.trf.xlu0
  %v349 = vpop.trf.xlu0
  %v350 = vpop.trf.xlu0
  %v351 = vpop.trf.xlu0
  %v352 = vpop.trf.xlu0
  %v353 = vpop.trf.xlu0
  %v354 = vpop.trf.xlu0
  %v355 = vpop.trf.xlu0
  %v356 = vpop.trf.xlu0
  %v358 = vsel %vm211, %v341, 0
  %v361 = vsel %vm211, %v342, 0
  %v364 = vsel %vm211, %v343, 0
  %v367 = vsel %vm211, %v344, 0
  %v370 = vsel %vm211, %v345, 0
  %v373 = vsel %vm211, %v346, 0
  %v376 = vsel %vm211, %v347, 0
  %v379 = vsel %vm211, %v348, 0
  %v382 = vsel %vm211, %v349, 0
  %v385 = vsel %vm211, %v350, 0
  %v388 = vsel %vm211, %v351, 0
  %v391 = vsel %vm211, %v352, 0
  %v394 = vsel %vm211, %v353, 0
  %v397 = vsel %vm211, %v354, 0
  %v400 = vsel %vm211, %v355, 0
  %v403 = vsel %vm211, %v356, 0
  %405 = vmatpush.msra.mxu0 0.0
  %406 = vmatpush.msra.mxu0 0.0
  %407 = vmatpush.msra.mxu0 0.0
  %408 = vmatpush.msra.mxu0 0.0
  %409 = vmatpush.msra.mxu0 0.0
  %410 = vmatpush.msra.mxu0 0.0
  %411 = vmatpush.msra.mxu0 0.0
  %412 = vmatpush.msra.mxu0 0.0
  %413 = vmatpush.msra.mxu0 0.0
  %414 = vmatpush.msra.mxu0 0.0
  %415 = vmatpush.msra.mxu0 0.0
  %416 = vmatpush.msra.mxu0 0.0
  %417 = vmatpush.msra.mxu0 %v47
  %418 = vmatpush.msra.mxu0 %v46
  %419 = vmatpush.msra.mxu0 %v45
  %420 = vmatpush.msra.mxu0 %v44
  %421 = vmatmul.f32.gmra.mxu0 %v358
  %v422 = vpop.f32.mrf.mxu0
  %v423 = vadd.f32 %v323, %v422
  %424 = vmatmul.f32.gmra.mxu0 %v361
  %v425 = vpop.f32.mrf.mxu0
  %v426 = vadd.f32 %v323, %v425
  %427 = vmatmul.f32.gmra.mxu0 %v364
  %v428 = vpop.f32.mrf.mxu0
  %v429 = vadd.f32 %v323, %v428
  %430 = vmatmul.f32.gmra.mxu0 %v367
  %v431 = vpop.f32.mrf.mxu0
  %v432 = vadd.f32 %v323, %v431
  %433 = vmatmul.f32.gmra.mxu0 %v370
  %v434 = vpop.f32.mrf.mxu0
  %v435 = vadd.f32 %v323, %v434
  %436 = vmatmul.f32.gmra.mxu0 %v373
  %v437 = vpop.f32.mrf.mxu0
  %v438 = vadd.f32 %v323, %v437
  %439 = vmatmul.f32.gmra.mxu0 %v376
  %v440 = vpop.f32.mrf.mxu0
  %v441 = vadd.f32 %v323, %v440
  %442 = vmatmul.f32.gmra.mxu0 %v379
  %v443 = vpop.f32.mrf.mxu0
  %v444 = vadd.f32 %v323, %v443
  %445 = vmatmul.f32.gmra.mxu0 %v382
  %v446 = vpop.f32.mrf.mxu0
  %v447 = vadd.f32 %v323, %v446
  %448 = vmatmul.f32.gmra.mxu0 %v385
  %v449 = vpop.f32.mrf.mxu0
  %v450 = vadd.f32 %v323, %v449
  %451 = vmatmul.f32.gmra.mxu0 %v388
  %v452 = vpop.f32.mrf.mxu0
  %v453 = vadd.f32 %v323, %v452
  %454 = vmatmul.f32.gmra.mxu0 %v391
  %v455 = vpop.f32.mrf.mxu0
  %v456 = vadd.f32 %v323, %v455
  %457 = vmatmul.f32.gmra.mxu0 %v394
  %v458 = vpop.f32.mrf.mxu0
  %v459 = vadd.f32 %v323, %v458
  %460 = vmatmul.f32.gmra.mxu0 %v397
  %v461 = vpop.f32.mrf.mxu0
  %v462 = vadd.f32 %v323, %v461
  %463 = vmatmul.f32.gmra.mxu0 %v400
  %v464 = vpop.f32.mrf.mxu0
  %v465 = vadd.f32 %v323, %v464
  %466 = vmatmul.f32.gmra.mxu0 %v403
  %v467 = vpop.f32.mrf.mxu0
  %v468 = vadd.f32 %v323, %v467
  %469 = vdwg.mxu0
  %vm470 = vcmask 48128
  %471 = vst.msk [vmem:[%s9] sm:$0xff] %vm470, %v423
  %472 = vst.msk [vmem:[%s9 + $0x8] sm:$0xff] %vm470, %v426
  %473 = vst.msk [vmem:[%s9 + $0x10] sm:$0xff] %vm470, %v429
  %474 = vst.msk [vmem:[%s9 + $0x18] sm:$0xff] %vm470, %v432
  %475 = vst.msk [vmem:[%s9 + $0x20] sm:$0xff] %vm470, %v435
  %476 = vst.msk [vmem:[%s9 + $0x28] sm:$0xff] %vm470, %v438
  %477 = vst.msk [vmem:[%s9 + $0x30] sm:$0xff] %vm470, %v441
  %478 = vst.msk [vmem:[%s9 + $0x38] sm:$0xff] %vm470, %v444
  %479 = vst.msk [vmem:[%s9 + $0x40] sm:$0xff] %vm470, %v447
  %480 = vst.msk [vmem:[%s9 + $0x48] sm:$0xff] %vm470, %v450
  %481 = vst.msk [vmem:[%s9 + $0x50] sm:$0xff] %vm470, %v453
  %482 = vst.msk [vmem:[%s9 + $0x58] sm:$0xff] %vm470, %v456
  %483 = vst.msk [vmem:[%s9 + $0x60] sm:$0xff] %vm470, %v459
  %484 = vst.msk [vmem:[%s9 + $0x68] sm:$0xff] %vm470, %v462
  %485 = vst.msk [vmem:[%s9 + $0x70] sm:$0xff] %vm470, %v465
  %486 = vst.msk [vmem:[%s9 + $0x78] sm:$0xff] %vm470, %v468
  // Predicated region
  $region38: #{atmosphere_net_forward.1} parent=0 // pred_check
    _
  $region39: #{atmosphere_net_forward.1} parent=0 // pred_check_branch
    %488 = sbr.rel (0) target = $region41
  $region40: #{atmosphere_net_forward.1} parent=0 // pred_region
    _
  $region41: #{atmosphere_net_forward.1} parent=0 // pred_fallthru
    _
  // Predicated region
  $region42: #{atmosphere_net_forward.1} parent=0 // pred_check
    _
  $region43: #{atmosphere_net_forward.1} parent=0 // pred_check_branch
    %490 = sbr.rel (0) target = $region45
  $region44: #{atmosphere_net_forward.1} parent=0 // pred_region
    _
  $region45: #{atmosphere_net_forward.1} parent=0 // pred_fallthru
    _

</llo_original>
